<compile_context>
chip_gen: v7x
topology: tpu7x:2x2x1
jax: 0.10.0
libtpu: 0.0.40
codegen_flags: <defaults>
</compile_context>

<pallas_src>
import functools

import jax
import jax.numpy as jnp
from jax.experimental import pallas as pl
from jax.experimental.pallas import tpu as pltpu


# ----------------------------------------------------------------------------
# Kernels
# ----------------------------------------------------------------------------

def _se_fused_kernel(x_ref, w1t_ref, w2t_ref, o_ref, *, inv_hw):
    """One (bt, C, HW) slab: pool -> fc1/ReLU -> fc2/Hardsigmoid -> rescale."""
    x = x_ref[...]                                               # input dtype, single load

    # Global average pool: f32-accumulated sum over lanes * (1 / true HW).
    # (No full-slab f32 copy; the convert fuses into the reduce.)
    pooled = jnp.sum(x, axis=-1, dtype=jnp.float32) * inv_hw     # (bt, C)

    # fc1: (bt, C) @ (C, r) -> (bt, r), ReLU.  Weights pre-transposed on host.
    f = jnp.dot(pooled, w1t_ref[...].astype(jnp.float32),
                preferred_element_type=jnp.float32)
    f = jnp.maximum(f, 0.0)

    # fc2: (bt, r) @ (r, C) -> (bt, C)
    g = jnp.dot(f, w2t_ref[...].astype(jnp.float32),
                preferred_element_type=jnp.float32)

    # Hardsigmoid: clip(x/6 + 1/2, 0, 1) (reciprocal multiply).
    g = jnp.clip(g * (1.0 / 6.0) + 0.5, 0.0, 1.0)                # (bt, C) f32

    # Per-channel rescale.  The big multiply stays in the input dtype (cheap
    # bf16 VPU path on v6e/v7x); for bf16 inputs this applies the gate at
    # bf16 precision — tiny difference vs. an f32-gated multiply.
    o_ref[...] = (x * g[:, :, None].astype(x.dtype)).astype(o_ref.dtype)


def _se_pool_kernel(x_ref, p_ref, *, hw, thw):
    """Two-phase pass 1: per-HW-tile partial sums, f32 accumulated."""
    h = pl.program_id(0)
    x = x_ref[...]                                               # (B, C, thw)
    # Mask lanes beyond the true HW (handles a partial last tile; padded VMEM
    # contents are unspecified).
    idx = jax.lax.broadcasted_iota(jnp.int32, x.shape, 2)
    mask = (h * thw + idx) < hw
    xm = jnp.where(mask, x, jnp.zeros_like(x))
    p_ref[...] = jnp.sum(xm, axis=-1, dtype=jnp.float32)[None]   # (1, B, C)


def _se_scale_kernel(x_ref, g_ref, o_ref):
    """Two-phase pass 2: per-channel rescale of one HW tile."""
    x = x_ref[...]                                               # (B, C, thw)
    g = g_ref[...]                                               # (B, C), input dtype
    o_ref[...] = (x * g[:, :, None]).astype(o_ref.dtype)


# ----------------------------------------------------------------------------
# Host-side sizing helpers
# ----------------------------------------------------------------------------

def _vmem_cap_bytes() -> int:
    try:
        return int(pltpu.get_tpu_info().vmem_capacity_bytes)
    except Exception:
        return 64 << 20  # conservative: v7x physical VMEM per TensorCore


def _default_target_block_bytes(cap: int) -> int:
    # ~cap/8 per streamed block -> 2 (in) + 2 (out) buffers ~= half of VMEM,
    # leaving room for temps.  128 MiB (v5e/v6e) -> 16 MiB, 64 MiB (v7x) -> 8 MiB.
    return int(min(16 << 20, max(2 << 20, cap // 8)))


def _pick_batch_tile(batch: int, bytes_per_batch: int, target_bytes: int) -> int:
    """Largest divisor of `batch` whose block stays under `target_bytes`,
    while keeping >= 2 grid steps when batch >= 2 (v7x megacore)."""
    best = 1
    for d in range(1, batch + 1):
        if batch % d != 0:
            continue
        if d * bytes_per_batch > target_bytes:
            break
        if batch // d >= 2 or batch == 1:
            best = d
    return best


def _round_up(v: int, m: int) -> int:
    return ((v + m - 1) // m) * m


# ----------------------------------------------------------------------------
# Wrappers
# ----------------------------------------------------------------------------

def _se_fused(x_flat, w1t, w2t, *, HW, target_block_bytes, cap, donate_x):
    B, C, _ = x_flat.shape
    r = w1t.shape[1]
    itemsize = jnp.dtype(x_flat.dtype).itemsize
    bytes_per_batch = C * HW * itemsize

    bt = _pick_batch_tile(B, bytes_per_batch, target_block_bytes)
    grid_b = B // bt
    # TODO(synk): on v7x (2 TCs/chip) with B == 1 the single-step grid leaves
    # one TensorCore idle; prefer the two-phase HW-split path there even when
    # the slab fits.

    # Explicit scoped-VMEM budget: double-buffered in/out blocks, the small
    # (double-buffered by default) weight blocks, gate/pool f32 temps, ~30%
    # headroom; floored at the smallest default limit, capped by physical VMEM.
    # (Weight blocks have a constant index_map; multi-buffering them is waste
    # but only 2*r*C elements here.)
    block_bytes = bt * bytes_per_batch
    w_bytes = (w1t.size + w2t.size) * jnp.dtype(w1t.dtype).itemsize
    temp_bytes = 8 * bt * (C + r) * 4
    vmem_limit = int(1.3 * (4 * block_bytes + 2 * w_bytes + temp_bytes))
    vmem_limit = max(vmem_limit, 16 << 20)
    vmem_limit = min(vmem_limit, int(0.9 * cap))

    kernel = functools.partial(_se_fused_kernel, inv_hw=1.0 / HW)
    extra = {"input_output_aliases": {0: 0}} if donate_x else {}

    return pl.pallas_call(
        kernel,
        out_shape=jax.ShapeDtypeStruct((B, C, HW), x_flat.dtype),
        grid_spec=pltpu.PrefetchScalarGridSpec(
            num_scalar_prefetch=0,
            grid=(grid_b,),
            in_specs=[
                # Full-extent last two dims -> exempt from the (8,128) rule;
                # non-128-multiple HW only costs a masked tail store.
                pl.BlockSpec((bt, C, HW), lambda b: (b, 0, 0)),   # x batch tile
                pl.BlockSpec((C, r), lambda b: (0, 0)),           # fc1 weight^T
                pl.BlockSpec((r, C), lambda b: (0, 0)),           # fc2 weight^T
            ],
            out_specs=pl.BlockSpec((bt, C, HW), lambda b: (b, 0, 0)),
        ),
        compiler_params=pltpu.CompilerParams(
            dimension_semantics=("parallel",),
            vmem_limit_bytes=vmem_limit,
        ),
        **extra,
    )(x_flat, w1t, w2t)


def _se_two_phase(x_flat, w1t, w2t, *, HW, target_block_bytes, cap):
    """HW-tiled fallback: pass 1 pools per tile, tiny FCs in plain JAX,
    pass 2 rescales.  Costs one extra HBM read of x but keeps VMEM blocks
    bounded and both passes fully parallel over HW tiles."""
    B, C, _ = x_flat.shape
    itemsize = jnp.dtype(x_flat.dtype).itemsize
    bytes_per_hw = B * C * itemsize

    thw = max(128, (target_block_bytes // max(bytes_per_hw, 1)) // 128 * 128)
    thw = min(thw, _round_up(HW, 128))
    n_hw = (HW + thw - 1) // thw

    block_bytes = bytes_per_hw * thw
    vmem_limit = int(1.3 * (4 * block_bytes + 8 * B * C * 4))
    vmem_limit = max(vmem_limit, 16 << 20)
    vmem_limit = min(vmem_limit, int(0.9 * cap))

    # Pass 1: per-tile partial sums (parallel over HW tiles); reduce the tiny
    # (n_hw, B, C) array in plain JAX.
    partials = pl.pallas_call(
        functools.partial(_se_pool_kernel, hw=HW, thw=thw),
        out_shape=jax.ShapeDtypeStruct((n_hw, B, C), jnp.float32),
        grid_spec=pltpu.PrefetchScalarGridSpec(
            num_scalar_prefetch=0,
            grid=(n_hw,),
            in_specs=[pl.BlockSpec((B, C, thw), lambda h: (0, 0, h))],
            out_specs=pl.BlockSpec((1, B, C), lambda h: (h, 0, 0)),
        ),
        compiler_params=pltpu.CompilerParams(
            dimension_semantics=("parallel",),
            vmem_limit_bytes=vmem_limit,
        ),
    )(x_flat)

    pooled = jnp.sum(partials, axis=0) * (1.0 / HW)                  # (B, C) f32
    f = jnp.maximum(pooled @ w1t.astype(jnp.float32), 0.0)           # (B, r)
    g = jnp.clip(f @ w2t.astype(jnp.float32) * (1.0 / 6.0) + 0.5, 0.0, 1.0)
    g = g.astype(x_flat.dtype)                                       # (B, C)

    # Pass 2: per-channel rescale, parallel over HW tiles.
    return pl.pallas_call(
        _se_scale_kernel,
        out_shape=jax.ShapeDtypeStruct((B, C, HW), x_flat.dtype),
        grid_spec=pltpu.PrefetchScalarGridSpec(
            num_scalar_prefetch=0,
            grid=(n_hw,),
            in_specs=[
                pl.BlockSpec((B, C, thw), lambda h: (0, 0, h)),
                pl.BlockSpec((B, C), lambda h: (0, 0)),
            ],
            out_specs=pl.BlockSpec((B, C, thw), lambda h: (0, 0, h)),
        ),
        compiler_params=pltpu.CompilerParams(
            dimension_semantics=("parallel",),
            vmem_limit_bytes=vmem_limit,
        ),
    )(x_flat, g)


def se_block(x, w1, w2, *, target_block_bytes=None, force_two_phase=False,
             donate_x=False):
    """SE block forward.  x: (B, C, H, W); w1: (r, C); w2: (C, r)."""
    B, C, H, W = x.shape
    HW = H * W

    x_flat = x.reshape(B, C, HW)
    # Pre-transpose the tiny FC weights on the host so both in-kernel matmuls
    # are plain (M,K)@(K,N) dots.
    w1t = jnp.transpose(w1)   # (C, r)
    w2t = jnp.transpose(w2)   # (r, C)

    cap = _vmem_cap_bytes()
    if target_block_bytes is None:
        target_block_bytes = _default_target_block_bytes(cap)

    itemsize = jnp.dtype(x.dtype).itemsize
    bytes_per_batch = C * HW * itemsize
    # Fused path keeps 2x(in+out) buffers <= ~60% of VMEM; otherwise fall back
    # to the two-phase HW-tiled path (matters first on v7x's 64 MiB/TC).
    fused_limit = max(int(0.15 * cap), target_block_bytes)

    if force_two_phase or bytes_per_batch > fused_limit:
        out_flat = _se_two_phase(x_flat, w1t, w2t, HW=HW,
                                 target_block_bytes=target_block_bytes, cap=cap)
    else:
        out_flat = _se_fused(x_flat, w1t, w2t, HW=HW,
                             target_block_bytes=target_block_bytes, cap=cap,
                             donate_x=donate_x)
    return out_flat.reshape(B, C, H, W)


def se_block_ref(x, w1, w2):
    """Pure-JAX reference matching the PyTorch forward."""
    pooled = jnp.mean(x, axis=(2, 3))                       # (B, C)
    f = jnp.maximum(pooled @ w1.T, 0.0)                     # (B, r)
    f = jnp.clip((f @ w2.T) / 6.0 + 0.5, 0.0, 1.0)          # (B, C)
    return x * f[:, :, None, None]


if __name__ == "__main__":
    key = jax.random.PRNGKey(0)
    B, C, H, W = 2, 8, 16, 16          # in_channels = 8  ->  r = 2
    r = C // 4

    kx, k1, k2 = jax.random.split(key, 3)
    x = jax.random.normal(kx, (B, C, H, W), dtype=jnp.float32)
    w1 = jax.random.normal(k1, (r, C), dtype=jnp.float32) * 0.1
    w2 = jax.random.normal(k2, (C, r), dtype=jnp.float32) * 0.1

    # Fused single-pass path (lane-aligned HW = 256).
    out = jax.block_until_ready(se_block(x, w1, w2))
    ref = se_block_ref(x, w1, w2)
    assert out.shape == (B, C, H, W)
    assert jnp.allclose(out, ref, atol=1e-5, rtol=1e-5), "mismatch vs reference"

    # Non-128-multiple HW (14*14 = 196): no wrapper pad/slice, masked tail store.
    x2 = jax.random.normal(kx, (B, C, 14, 14), dtype=jnp.float32)
    out2 = jax.block_until_ready(se_block(x2, w1, w2))
    ref2 = se_block_ref(x2, w1, w2)
    assert out2.shape == (B, C, 14, 14)
    assert jnp.allclose(out2, ref2, atol=1e-5, rtol=1e-5), "mismatch (non-128 HW)"

    # Two-phase HW-tiled fallback (used for slabs too big for one fused VMEM
    # block, e.g. large feature maps on v7x) — forced here at small shapes.
    out3 = jax.block_until_ready(
        se_block(x, w1, w2, force_two_phase=True, target_block_bytes=8 * 1024))
    assert jnp.allclose(out3, ref, atol=1e-5, rtol=1e-5), "mismatch (two-phase)"

    print("KERNEL_OK")
</pallas_src>

<mosaic_0001>
module attributes {stable_mosaic.version = 11 : i64} {
  func.func @_se_fused_kernel(%arg0: i32, %arg1: memref<1x8x256xf32, #tpu.memory_space<vmem>>, %arg2: memref<8x2xf32, #tpu.memory_space<vmem>>, %arg3: memref<2x8xf32, #tpu.memory_space<vmem>>, %arg4: memref<1x8x256xf32, #tpu.memory_space<vmem>>) attributes {dimension_semantics = [#tpu.dimension_semantics<parallel>], iteration_bounds = array<i64: 2>, scalar_prefetch = 0 : i64, scratch_operands = 0 : i64, tpu.core_type = #tpu.core_type<tc>, window_params = [{transform_indices = @transform_0, window_bounds = array<i64: 1, 8, 256>}, {pipeline_mode = #tpu.pipeline_mode<synchronous>, transform_indices = @transform_1, window_bounds = array<i64: 8, 2>}, {pipeline_mode = #tpu.pipeline_mode<synchronous>, transform_indices = @transform_2, window_bounds = array<i64: 2, 8>}, {transform_indices = @transform_3, window_bounds = array<i64: 1, 8, 256>}]} {
    %c0 = arith.constant 0 : index
    %c0_0 = arith.constant 0 : index
    %c0_1 = arith.constant 0 : index
    %0 = vector.load %arg1[%c0, %c0_0, %c0_1] : memref<1x8x256xf32, #tpu.memory_space<vmem>>, vector<1x8x256xf32>
    %cst = arith.constant dense<0.000000e+00> : vector<1x8xf32>
    %1 = vector.multi_reduction <add>, %0, %cst [2] : vector<1x8x256xf32> to vector<1x8xf32>
    %cst_2 = arith.constant 3.906250e-03 : f32
    %2 = vector.broadcast %cst_2 : f32 to vector<1x8xf32>
    %3 = arith.mulf %1, %2 : vector<1x8xf32>
    %c0_3 = arith.constant 0 : index
    %c0_4 = arith.constant 0 : index
    %4 = vector.load %arg2[%c0_3, %c0_4] : memref<8x2xf32, #tpu.memory_space<vmem>>, vector<8x2xf32>
    %cst_5 = arith.constant dense<0.000000e+00> : vector<1x2xf32>
    %5 = tpu.matmul %3, %4, %cst_5 {dimension_numbers = #tpu.dot_dimension_numbers<[1], [0], [0], [1], [0, 0, 1, 1], [], []>} : vector<1x8xf32>, vector<8x2xf32>, vector<1x2xf32> -> vector<1x2xf32>
    %cst_6 = arith.constant 0.000000e+00 : f32
    %6 = vector.broadcast %cst_6 : f32 to vector<1x2xf32>
    %7 = arith.maximumf %5, %6 : vector<1x2xf32>
    %c0_7 = arith.constant 0 : index
    %c0_8 = arith.constant 0 : index
    %8 = vector.load %arg3[%c0_7, %c0_8] : memref<2x8xf32, #tpu.memory_space<vmem>>, vector<2x8xf32>
    %cst_9 = arith.constant dense<0.000000e+00> : vector<1x8xf32>
    %9 = tpu.matmul %7, %8, %cst_9 {dimension_numbers = #tpu.dot_dimension_numbers<[1], [0], [0], [1], [0, 0, 1, 1], [], []>} : vector<1x2xf32>, vector<2x8xf32>, vector<1x8xf32> -> vector<1x8xf32>
    %cst_10 = arith.constant 0.166666672 : f32
    %10 = vector.broadcast %cst_10 : f32 to vector<1x8xf32>
    %11 = arith.mulf %9, %10 : vector<1x8xf32>
    %cst_11 = arith.constant 5.000000e-01 : f32
    %12 = vector.broadcast %cst_11 : f32 to vector<1x8xf32>
    %13 = arith.addf %11, %12 : vector<1x8xf32>
    %cst_12 = arith.constant 0.000000e+00 : f32
    %cst_13 = arith.constant 1.000000e+00 : f32
    %14 = vector.broadcast %cst_12 : f32 to vector<1x8xf32>
    %15 = arith.maximumf %14, %13 : vector<1x8xf32>
    %16 = vector.broadcast %cst_13 : f32 to vector<1x8xf32>
    %17 = arith.minimumf %16, %15 : vector<1x8xf32>
    %18 = vector.shape_cast %17 : vector<1x8xf32> to vector<1x8x1xf32>
    %19 = vector.broadcast %18 : vector<1x8x1xf32> to vector<1x8x256xf32>
    %20 = arith.mulf %0, %19 : vector<1x8x256xf32>
    %c0_14 = arith.constant 0 : index
    %c0_15 = arith.constant 0 : index
    %c0_16 = arith.constant 0 : index
    %21 = vector.load %arg4[%c0_14, %c0_15, %c0_16] : memref<1x8x256xf32, #tpu.memory_space<vmem>>, vector<1x8x256xf32>
    tpu.vector_store %arg4[%c0_14, %c0_15, %c0_16], %20 {strides = array<i32>} : memref<1x8x256xf32, #tpu.memory_space<vmem>>, vector<1x8x256xf32>,
    return
  }
  func.func @transform_0(%arg0: i32) -> (i32, i32, i32) {
    %c0_i32 = arith.constant 0 : i32
    %c0_i32_0 = arith.constant 0 : i32
    %c0_i32_1 = arith.constant 0 : i32
    return %arg0, %c0_i32, %c0_i32_0 : i32, i32, i32
  }
  func.func @transform_1(%arg0: i32) -> (i32, i32) {
    %c0_i32 = arith.constant 0 : i32
    %c0_i32_0 = arith.constant 0 : i32
    %c0_i32_1 = arith.constant 0 : i32
    return %c0_i32, %c0_i32_0 : i32, i32
  }
  func.func @transform_2(%arg0: i32) -> (i32, i32) {
    %c0_i32 = arith.constant 0 : i32
    %c0_i32_0 = arith.constant 0 : i32
    %c0_i32_1 = arith.constant 0 : i32
    return %c0_i32, %c0_i32_0 : i32, i32
  }
  func.func @transform_3(%arg0: i32) -> (i32, i32, i32) {
    %c0_i32 = arith.constant 0 : i32
    %c0_i32_0 = arith.constant 0 : i32
    %c0_i32_1 = arith.constant 0 : i32
    return %arg0, %c0_i32, %c0_i32_0 : i32, i32, i32
  }
}

</mosaic_0001>

<llo_original>
// kernel: tpu_custom_call.1
$region0: #{tpu_custom_call.1}
  #allocation0 [shape = 'u32[]', space=smem, size = 0x4, offset = 0x4, fixed_abs, tag = 'smem constant byte address 0x4 - core index']
  #allocation1 [shape = 'u32[144,128]{1,0:T(1,128)}', space=vmem, size = 0x12000, scoped, tag = 'internal scratch']
  %s0 = inlined_call_operand.hbm [shape: f32[2,8,256], index: 0, kind: input, shape index: {}]
  %s1 = inlined_call_operand.vmem [shape: f32[8,2], index: 1, kind: input, shape index: {}]
  %s2 = inlined_call_operand.vmem [shape: f32[2,8], index: 2, kind: input, shape index: {}]
  %s3 = inlined_call_operand.hbm [shape: f32[2,8,256], index: 3, kind: output, shape index: {}]
  %s4 = sld [smem:[#allocation0]]
  $region49: #{tpu_custom_call.1} parent=0
    _
  %s6 = ssub.s32 1, %s4
  %s7 = scalar_select 0, %s6, %s4
  $region1: #{tpu_custom_call.1} parent=0
    #allocation2 [shape = 'u8[16384]{0}', space=vmem, size = 0x4000, scoped, tag = 'input window, operand 0']
    #allocation3 [shape = 's32[2]{0}', space=sflag, size = 0x8, scoped, tag = 'scoped memory for tpu_custom_call.1']
    #allocation4 [shape = 's32[2]{0}', space=sflag, size = 0x8, scoped, tag = 'scoped memory for tpu_custom_call.1']
    #allocation5 [shape = 'u8[16384]{0}', space=vmem, size = 0x4000, scoped, tag = 'output window, operand 0']
    %8 = vsyncpa [#allocation3], 0
    %s9 = scalar_lea.sflag [#allocation3], 1
    %10 = vsyncpa %s9, 0
    %11 = vsyncpa [#allocation4], 0
    %s12 = scalar_lea.sflag [#allocation4], 1
    %13 = vsyncpa %s12, 0
    loop: start=0, step=1, limit=4
    $region2: #{tpu_custom_call.1} parent=1 // loop_pre_header
      _
    $region3: #{tpu_custom_call.1} parent=1 // loop_header
      %s15 = sphi 0, %s19
      %p16 = scmp.ge.s32.totalorder %s15, 4
      %s25 = sphi 0, %s27
      %s28 = sphi 0, %s25
      %s29 = sphi 0, %s28
      %s45 = sphi 0, %s29
      %s49 = sphi 0, %s49
      %s51 = sphi 0, %s49
      %s52 = sphi 0, %s51
      %s66 = sphi 0, %s52
      %s70 = sphi 0, %s70
      %s72 = sphi 0, %s70
      %s73 = sphi 0, %s72
      %s87 = sphi 0, %s73
      %s93 = sphi 0, %s95
      %s96 = sphi 0, %s93
      %s97 = sphi 0, %s96
      %s113 = sphi 0, %s97
    $region4: #{tpu_custom_call.1} parent=1 // loop_header_branch
      %18 = sbr.rel (%p16) target = $region8
    $region5: #{tpu_custom_call.1} parent=1 // loop_body
      %s20 = ssub.s32 %s15, 1
      %s21 = ssub.s32 %s15, 2
      %s22 = sadd.s32 %s15, 1
      %s23 = ssub.s32 %s15, %s22
      %p24 = scmp.eq.s32.totalorder %s23, 0
      %s26 = sadd.s32 %s25, 1
      %s27 = scalar_select %p24, %s25, %s26
      %p30 = pneg %p24
      %p31 = scmp.eq.s32.totalorder %s15, 1
      %p32 = por %p30, %p31
      %p33 = scmp.ne.s32.totalorder %s25, %s28
      %p34 = scmp.eq.s32.totalorder %s15, 0
      %p35 = por %p33, %p34
      %p36 = scmp.ne.s32.totalorder %s25, %s28
      %p37 = scmp.eq.s32.totalorder %s20, 1
      %p38 = por %p36, %p37
      %p39 = scmp.ne.s32.totalorder %s28, %s29
      %p40 = scmp.eq.s32.totalorder %s20, 0
      %p41 = por %p39, %p40
      %p42 = scmp.ne.s32.totalorder %s28, %s29
      %p43 = scmp.eq.s32.totalorder %s21, 1
      %p44 = por %p42, %p43
      %p46 = scmp.ne.s32.totalorder %s29, %s45
      %p47 = scmp.eq.s32.totalorder %s21, 0
      %p48 = por %p46, %p47
      %s50 = sadd.s32 %s49, 1
      %p53 = scmp.eq.s32.totalorder %s15, 1
      %p54 = scmp.ne.s32.totalorder %s49, %s51
      %p55 = scmp.eq.s32.totalorder %s15, 0
      %p56 = por %p54, %p55
      %p57 = scmp.ne.s32.totalorder %s49, %s51
      %p58 = scmp.eq.s32.totalorder %s20, 1
      %p59 = por %p57, %p58
      %p60 = scmp.ne.s32.totalorder %s51, %s52
      %p61 = scmp.eq.s32.totalorder %s20, 0
      %p62 = por %p60, %p61
      %p63 = scmp.ne.s32.totalorder %s51, %s52
      %p64 = scmp.eq.s32.totalorder %s21, 1
      %p65 = por %p63, %p64
      %p67 = scmp.ne.s32.totalorder %s52, %s66
      %p68 = scmp.eq.s32.totalorder %s21, 0
      %p69 = por %p67, %p68
      %s71 = sadd.s32 %s70, 1
      %p74 = scmp.eq.s32.totalorder %s15, 1
      %p75 = scmp.ne.s32.totalorder %s70, %s72
      %p76 = scmp.eq.s32.totalorder %s15, 0
      %p77 = por %p75, %p76
      %p78 = scmp.ne.s32.totalorder %s70, %s72
      %p79 = scmp.eq.s32.totalorder %s20, 1
      %p80 = por %p78, %p79
      %p81 = scmp.ne.s32.totalorder %s72, %s73
      %p82 = scmp.eq.s32.totalorder %s20, 0
      %p83 = por %p81, %p82
      %p84 = scmp.ne.s32.totalorder %s72, %s73
      %p85 = scmp.eq.s32.totalorder %s21, 1
      %p86 = por %p84, %p85
      %p88 = scmp.ne.s32.totalorder %s73, %s87
      %p89 = scmp.eq.s32.totalorder %s21, 0
      %p90 = por %p88, %p89
      %s91 = ssub.s32 %s15, %s22
      %p92 = scmp.eq.s32.totalorder %s91, 0
      %s94 = sadd.s32 %s93, 1
      %s95 = scalar_select %p92, %s93, %s94
      %p98 = pneg %p92
      %p99 = scmp.eq.s32.totalorder %s15, 1
      %p100 = por %p98, %p99
      %p101 = scmp.ne.s32.totalorder %s93, %s96
      %p102 = scmp.eq.s32.totalorder %s15, 0
      %p103 = por %p101, %p102
      %p104 = scmp.ne.s32.totalorder %s93, %s96
      %p105 = scmp.eq.s32.totalorder %s20, 1
      %p106 = por %p104, %p105
      %p107 = scmp.ne.s32.totalorder %s96, %s97
      %p108 = scmp.eq.s32.totalorder %s20, 0
      %p109 = por %p107, %p108
      %p110 = scmp.ne.s32.totalorder %s96, %s97
      %p111 = scmp.eq.s32.totalorder %s21, 1
      %p112 = por %p110, %p111
      %p114 = scmp.ne.s32.totalorder %s97, %s113
      %p115 = scmp.eq.s32.totalorder %s21, 0
      %p116 = por %p114, %p115
      %p117 = scmp.le.s32.totalorder 1, %s15
      %p118 = scmp.lt.s32.totalorder %s15, 3
      %p119 = pnand %p117, %p118
      %p120 = pneg %p119
      // Predicated region
      $region9: #{tpu_custom_call.1} parent=5 // pred_check
        _
      $region10: #{tpu_custom_call.1} parent=5 // pred_check_branch
        %122 = sbr.rel (%p119) target = $region12
      $region11: #{tpu_custom_call.1} parent=5 // pred_region
        %s123 = ssub.s32 %s15, 1
        // Predicated region
        $region13: #{tpu_custom_call.1} parent=11 // pred_check
          %p124 = pneg %p62
        $region14: #{tpu_custom_call.1} parent=11 // pred_check_branch
          %126 = sbr.rel (%p124) target = $region16
        $region15: #{tpu_custom_call.1} parent=11 // pred_region
          _
        $region16: #{tpu_custom_call.1} parent=11 // pred_fallthru
          _
        // Predicated region
        $region17: #{tpu_custom_call.1} parent=11 // pred_check
          %p127 = pneg %p83
        $region18: #{tpu_custom_call.1} parent=11 // pred_check_branch
          %129 = sbr.rel (%p127) target = $region20
        $region19: #{tpu_custom_call.1} parent=11 // pred_region
          _
        $region20: #{tpu_custom_call.1} parent=11 // pred_fallthru
          _
      $region12: #{tpu_custom_call.1} parent=5 // pred_fallthru
        _
      %p130 = scmp.lt.s32.totalorder %s15, 2
      // Predicated region
      $region21: #{tpu_custom_call.1} parent=5 // pred_check
        %p131 = pneg %p130
      $region22: #{tpu_custom_call.1} parent=5 // pred_check_branch
        %133 = sbr.rel (%p131) target = $region24
      $region23: #{tpu_custom_call.1} parent=5 // pred_region
        // Predicated region
        $region25: #{tpu_custom_call.1} parent=23 // pred_check
          %p134 = pneg %p35
        $region26: #{tpu_custom_call.1} parent=23 // pred_check_branch
          %136 = sbr.rel (%p134) target = $region28
        $region27: #{tpu_custom_call.1} parent=23 // pred_region
          %s137 = sand.u32 %s25, 1
          %s138 = scalar_lea.sflag [#allocation3], %s137
          %s139 = sand.u32 %s25, 1
          %s140 = smul.addr %s139, 16
          %s141 = scalar_lea.vmem [#allocation2], %s140
          %s143 = ssub.s32 256, 256
          %144 = vsyncadd %s138, %s143
          %s145 = smul.addr %s15, 2
          %s146 = smul.addr %s145, 128
          %s147 = scalar_lea.hbm %s0, %s146
          %s149 = sshll.u32 %s141, 4
          %s150 = int_to_ptr.vmem [resolvable:$true] %s149
          %152 = dma.hbm_to_vmem [thread:$0]  %s147, 256, %s150, %s138
        $region28: #{tpu_custom_call.1} parent=23 // pred_fallthru
          _
      $region24: #{tpu_custom_call.1} parent=5 // pred_fallthru
        _
      %p153 = scmp.le.s32.totalorder 1, %s15
      %p154 = scmp.lt.s32.totalorder %s15, 3
      %p155 = pnand %p153, %p154
      %p156 = pneg %p155
      // Predicated region
      $region29: #{tpu_custom_call.1} parent=5 // pred_check
        _
      $region30: #{tpu_custom_call.1} parent=5 // pred_check_branch
        %158 = sbr.rel (%p155) target = $region32
      $region31: #{tpu_custom_call.1} parent=5 // pred_region
        %s159 = ssub.s32 %s15, 1
        %s160 = sand.u32 %s28, 1
        %s161 = scalar_lea.sflag [#allocation3], %s160
        %s162 = sand.u32 %s28, 1
        %s163 = smul.addr %s162, 16
        %s164 = scalar_lea.vmem [#allocation2], %s163
        // Predicated region
        $region33: #{tpu_custom_call.1} parent=31 // pred_check
          %p165 = pneg %p41
        $region34: #{tpu_custom_call.1} parent=31 // pred_check_branch
          %167 = sbr.rel (%p165) target = $region36
        $region35: #{tpu_custom_call.1} parent=31 // pred_region
          %168 = dma.done %s161, 256
        $region36: #{tpu_custom_call.1} parent=31 // pred_fallthru
          _
        %s169 = sand.u32 %s28, 1
        %s170 = scalar_lea.sflag [#allocation3], %s169
        %s171 = sand.u32 %s28, 1
        %s172 = smul.addr %s171, 16
        %s173 = scalar_lea.vmem [#allocation2], %s172
        %p174 = pneg %p41
        %p175 = pneg %p38
        %p176 = pneg %p62
        %p177 = pneg %p59
        %p178 = pneg %p83
        %p179 = pneg %p80
        %p180 = pneg %p109
        %p181 = pneg %p106
        %s182 = sand.u32 %s96, 1
        %s183 = scalar_lea.sflag [#allocation4], %s182
        %s184 = sand.u32 %s96, 1
        %s185 = smul.addr %s184, 16
        %s186 = scalar_lea.vmem [#allocation5], %s185
        %v187 = vld [vmem:[%s164] sm:$0xff]
        %v188 = vld [vmem:[%s164 + $0x8] sm:$0xff]
        %v189 = vadd.f32 %v187, %v188
        %190 = vadd.xlane.f32.xlu0 %v189
        %v191 = vpop.xlane.xlu0 %190
        %v192 = vmul.f32 %v191, 0.00390625
        %v193 = vld [vmem:[%s1] sm:$0xff]
        %v195 = vlaneseq
        %v196 = vand.u32 %v195, 127
        %v197 = vlaneseq
        %v198 = vshrl.u32 %v197, 7
        %v199 = vsub.s32 %v196, %v198
        %v200 = vrot.slane %v192, %v199
        %vm201 = vcmask 64512
        %v202 = vsel %vm201, %v200, 0
        %204 = vmatprep.subr.mxu0 0.0
        %205 = vmatpush1.msra.mxu0 %v193
        %206 = vmatprep.subr.mxu0 0.0
        %207 = vmatpush1.msra.mxu0 0.0
        %208 = vmatprep.subr.mxu0 0.0
        %209 = vmatpush1.msra.mxu0 0.0
        %210 = vmatprep.subr.mxu0 0.0
        %211 = vmatpush1.msra.mxu0 0.0
        %212 = vmatprep.subr.mxu0 0.0
        %213 = vmatpush1.msra.mxu0 0.0
        %214 = vmatprep.subr.mxu0 0.0
        %215 = vmatpush1.msra.mxu0 0.0
        %216 = vmatprep.subr.mxu0 0.0
        %217 = vmatpush1.msra.mxu0 0.0
        %218 = vmatprep.subr.mxu0 0.0
        %219 = vmatpush1.msra.mxu0 0.0
        %220 = vmatprep.subr.mxu0 0.0
        %221 = vmatpush1.msra.mxu0 0.0
        %222 = vmatprep.subr.mxu0 0.0
        %223 = vmatpush1.msra.mxu0 0.0
        %224 = vmatprep.subr.mxu0 0.0
        %225 = vmatpush1.msra.mxu0 0.0
        %226 = vmatprep.subr.mxu0 0.0
        %227 = vmatpush1.msra.mxu0 0.0
        %228 = vmatprep.subr.mxu0 0.0
        %229 = vmatpush1.msra.mxu0 0.0
        %230 = vmatprep.subr.mxu0 0.0
        %231 = vmatpush1.msra.mxu0 0.0
        %232 = vmatprep.subr.mxu0 0.0
        %233 = vmatpush1.msra.mxu0 0.0
        %234 = vmatprep.subr.mxu0 0.0
        %235 = vmatpush1.msra.mxu0 0.0
        %236 = vmatprep.subr.mxu0 0.0
        %237 = vmatpush1.msra.mxu0 0.0
        %238 = vmatprep.subr.mxu0 0.0
        %239 = vmatpush1.msra.mxu0 0.0
        %240 = vmatprep.subr.mxu0 0.0
        %241 = vmatpush1.msra.mxu0 0.0
        %242 = vmatprep.subr.mxu0 0.0
        %243 = vmatpush1.msra.mxu0 0.0
        %244 = vmatprep.subr.mxu0 0.0
        %245 = vmatpush1.msra.mxu0 0.0
        %246 = vmatprep.subr.mxu0 0.0
        %247 = vmatpush1.msra.mxu0 0.0
        %248 = vmatprep.subr.mxu0 0.0
        %249 = vmatpush1.msra.mxu0 0.0
        %250 = vmatprep.subr.mxu0 0.0
        %251 = vmatpush1.msra.mxu0 0.0
        %252 = vmatprep.subr.mxu0 0.0
        %253 = vmatpush1.msra.mxu0 0.0
        %254 = vmatprep.subr.mxu0 0.0
        %255 = vmatpush1.msra.mxu0 0.0
        %256 = vmatprep.subr.mxu0 0.0
        %257 = vmatpush1.msra.mxu0 0.0
        %258 = vmatprep.subr.mxu0 0.0
        %259 = vmatpush1.msra.mxu0 0.0
        %260 = vmatprep.subr.mxu0 0.0
        %261 = vmatpush1.msra.mxu0 0.0
        %262 = vmatprep.subr.mxu0 0.0
        %263 = vmatpush1.msra.mxu0 0.0
        %264 = vmatprep.subr.mxu0 0.0
        %265 = vmatpush1.msra.mxu0 0.0
        %266 = vmatprep.subr.mxu0 0.0
        %267 = vmatpush1.msra.mxu0 0.0
        %268 = vmatprep.mubr.f32.mxu0 0.0
        %269 = vmatmul.mubr.f32.gmra.mrb[0].mxu0 %v202
        %v270 = vpop.f32.mrb[0].mxu0
        %v271 = vadd.f32 0.0, %v270
        %v272 = vpop.f32.mrb[0].mxu0
        %273 = vdwg.mxu0
        %v274 = vmax.f32 %v271, 0.0
        %v275 = vld [vmem:[%s2] sm:$0x3]
        %vm276 = vcmask 15360
        %v278 = vsel %vm276, %v274, 0
        %vm280 = vcmask 1041408
        %v282 = vsel %vm280, %v275, 0
        %284 = vmatprep.subr.mxu0 0.0
        %285 = vmatpush1.msra.mxu0 %v282
        %286 = vmatprep.subr.mxu0 0.0
        %287 = vmatpush1.msra.mxu0 0.0
        %288 = vmatprep.subr.mxu0 0.0
        %289 = vmatpush1.msra.mxu0 0.0
        %290 = vmatprep.subr.mxu0 0.0
        %291 = vmatpush1.msra.mxu0 0.0
        %292 = vmatprep.subr.mxu0 0.0
        %293 = vmatpush1.msra.mxu0 0.0
        %294 = vmatprep.subr.mxu0 0.0
        %295 = vmatpush1.msra.mxu0 0.0
        %296 = vmatprep.subr.mxu0 0.0
        %297 = vmatpush1.msra.mxu0 0.0
        %298 = vmatprep.subr.mxu0 0.0
        %299 = vmatpush1.msra.mxu0 0.0
        %300 = vmatprep.subr.mxu0 0.0
        %301 = vmatpush1.msra.mxu0 0.0
        %302 = vmatprep.subr.mxu0 0.0
        %303 = vmatpush1.msra.mxu0 0.0
        %304 = vmatprep.subr.mxu0 0.0
        %305 = vmatpush1.msra.mxu0 0.0
        %306 = vmatprep.subr.mxu0 0.0
        %307 = vmatpush1.msra.mxu0 0.0
        %308 = vmatprep.subr.mxu0 0.0
        %309 = vmatpush1.msra.mxu0 0.0
        %310 = vmatprep.subr.mxu0 0.0
        %311 = vmatpush1.msra.mxu0 0.0
        %312 = vmatprep.subr.mxu0 0.0
        %313 = vmatpush1.msra.mxu0 0.0
        %314 = vmatprep.subr.mxu0 0.0
        %315 = vmatpush1.msra.mxu0 0.0
        %316 = vmatprep.subr.mxu0 0.0
        %317 = vmatpush1.msra.mxu0 0.0
        %318 = vmatprep.subr.mxu0 0.0
        %319 = vmatpush1.msra.mxu0 0.0
        %320 = vmatprep.subr.mxu0 0.0
        %321 = vmatpush1.msra.mxu0 0.0
        %322 = vmatprep.subr.mxu0 0.0
        %323 = vmatpush1.msra.mxu0 0.0
        %324 = vmatprep.subr.mxu0 0.0
        %325 = vmatpush1.msra.mxu0 0.0
        %326 = vmatprep.subr.mxu0 0.0
        %327 = vmatpush1.msra.mxu0 0.0
        %328 = vmatprep.subr.mxu0 0.0
        %329 = vmatpush1.msra.mxu0 0.0
        %330 = vmatprep.subr.mxu0 0.0
        %331 = vmatpush1.msra.mxu0 0.0
        %332 = vmatprep.subr.mxu0 0.0
        %333 = vmatpush1.msra.mxu0 0.0
        %334 = vmatprep.subr.mxu0 0.0
        %335 = vmatpush1.msra.mxu0 0.0
        %336 = vmatprep.subr.mxu0 0.0
        %337 = vmatpush1.msra.mxu0 0.0
        %338 = vmatprep.subr.mxu0 0.0
        %339 = vmatpush1.msra.mxu0 0.0
        %340 = vmatprep.subr.mxu0 0.0
        %341 = vmatpush1.msra.mxu0 0.0
        %342 = vmatprep.subr.mxu0 0.0
        %343 = vmatpush1.msra.mxu0 0.0
        %344 = vmatprep.subr.mxu0 0.0
        %345 = vmatpush1.msra.mxu0 0.0
        %346 = vmatprep.subr.mxu0 0.0
        %347 = vmatpush1.msra.mxu0 0.0
        %348 = vmatprep.mubr.f32.mxu0 0.0
        %349 = vmatmul.mubr.f32.gmra.mrb[0].mxu0 %v278
        %v350 = vpop.f32.mrb[0].mxu0
        %v351 = vadd.f32 0.0, %v350
        %v352 = vpop.f32.mrb[0].mxu0
        %353 = vdwg.mxu0
        %v354 = vmul.f32 %v351, 0.16666667
        %v355 = vadd.f32 %v354, 0.5
        %v356 = vmax.f32 %v355, 0.0
        %v357 = vmin.f32 %v356, 1.0
        %v358 = vlaneseq
        %v359 = vshrl.u32 %v358, 7
        %v360 = vsub.s32 0, %v359
        %v361 = vrot.slane %v357, %v360
        %363 = vbcast.lane.b32.xlu0 %v361, 256
        %v364 = vpop.permute.xlu0 %363
        %v365 = vmul.f32 %v187, %v364
        %v366 = vmul.f32 %v188, %v364
        %367 = vst [vmem:[%s186] sm:$0xff] %v365
        %368 = vst [vmem:[%s186 + $0x8] sm:$0xff] %v366
        %s369 = sand.u32 %s96, 1
        %s370 = scalar_lea.sflag [#allocation4], %s369
        %s371 = sand.u32 %s96, 1
        %s372 = smul.addr %s371, 16
        %s373 = scalar_lea.vmem [#allocation5], %s372
        // Predicated region
        $region37: #{tpu_custom_call.1} parent=31 // pred_check
          %p374 = pneg %p106
        $region38: #{tpu_custom_call.1} parent=31 // pred_check_branch
          %376 = sbr.rel (%p374) target = $region40
        $region39: #{tpu_custom_call.1} parent=31 // pred_region
          %s378 = ssub.s32 256, 256
          %379 = vsyncadd %s370, %s378
          %s380 = smul.addr %s20, 2
          %s381 = smul.addr %s380, 128
          %s382 = scalar_lea.hbm %s3, %s381
          %s384 = sshll.u32 %s373, 4
          %s385 = int_to_ptr.vmem [resolvable:$true] %s384
          %387 = dma.vmem_to_hbm [thread:$0]  %s385, 256, %s382, %s370
        $region40: #{tpu_custom_call.1} parent=31 // pred_fallthru
          _
      $region32: #{tpu_custom_call.1} parent=5 // pred_fallthru
        _
      %p388 = scmp.le.s32.totalorder 2, %s15
      // Predicated region
      $region41: #{tpu_custom_call.1} parent=5 // pred_check
        %p389 = pneg %p388
      $region42: #{tpu_custom_call.1} parent=5 // pred_check_branch
        %391 = sbr.rel (%p389) target = $region44
      $region43: #{tpu_custom_call.1} parent=5 // pred_region
        %s392 = ssub.s32 %s15, 2
        // Predicated region
        $region45: #{tpu_custom_call.1} parent=43 // pred_check
          %p393 = pneg %p112
        $region46: #{tpu_custom_call.1} parent=43 // pred_check_branch
          %395 = sbr.rel (%p393) target = $region48
        $region47: #{tpu_custom_call.1} parent=43 // pred_region
          %s396 = sand.u32 %s97, 1
          %s397 = scalar_lea.sflag [#allocation4], %s396
          %s398 = sand.u32 %s97, 1
          %s399 = smul.addr %s398, 16
          %s400 = scalar_lea.vmem [#allocation5], %s399
          %401 = dma.done %s397, 256
        $region48: #{tpu_custom_call.1} parent=43 // pred_fallthru
          _
      $region44: #{tpu_custom_call.1} parent=5 // pred_fallthru
        _
    $region6: #{tpu_custom_call.1} parent=1 // loop_footer
      %s19 = sadd.s32 1, %s15
    $region7: #{tpu_custom_call.1} parent=1 // loop_footer_branch
      %14 = sbr.rel target = $region3
    $region8: #{tpu_custom_call.1} parent=1 // loop_exit
      _
    %402 = vsyncpa [#allocation3], 1
    %s403 = scalar_lea.sflag [#allocation3], 1
    %404 = vsyncpa %s403, 1
    %405 = vsyncpa [#allocation4], 1
    %s406 = scalar_lea.sflag [#allocation4], 1
    %407 = vsyncpa %s406, 1

</llo_original>
